<compile_context>
chip_gen: v7x
topology: tpu7x:2x2x1
jax: 0.10.0
libtpu: 0.0.40
codegen_flags: <defaults>
</compile_context>

<pallas_src>
import functools

import jax
import jax.numpy as jnp
from jax import lax
from jax.experimental import pallas as pl
from jax.experimental.pallas import tpu as pltpu


_NEG_BIG = -1e30  # finite (bf16/f32-representable) "minus infinity" for masked logits


# --------------------------------------------------------------------------- #
# Kernels
# --------------------------------------------------------------------------- #
def _kl_rows_single_kernel(s_ref, t_ref, o_ref, *, inv_t, c_total, need_col_mask):
    """Whole class axis in one tile: per-row KL directly, no running scratch."""
    x = s_ref[...].astype(jnp.float32) * inv_t      # scaled student logits
    t = t_ref[...].astype(jnp.float32)              # teacher probabilities

    if need_col_mask:                               # static: only for ragged C
        col = lax.broadcasted_iota(jnp.int32, x.shape, dimension=1)
        valid = col < c_total
        x = jnp.where(valid, x, _NEG_BIG)
        t = jnp.where(valid, t, 0.0)

    m = jnp.max(x, axis=-1, keepdims=True)
    lse = m + jnp.log(jnp.sum(jnp.exp(x - m), axis=-1, keepdims=True))
    # t * log(max(t, tiny)) == 0 exactly when t == 0 (PyTorch kl_div convention).
    log_t = jnp.log(jnp.maximum(t, 1e-30))
    ab = jnp.sum(t * (log_t - x), axis=-1, keepdims=True)   # fused A - B term
    w = jnp.sum(t, axis=-1, keepdims=True)
    o_ref[...] = ab + lse * w


def _kl_rows_stream_kernel(s_ref, t_ref, o_ref, m_sc, l_sc, ab_sc, w_sc, *,
                           inv_t, c_total, tc, need_col_mask):
    """Streaming class tiles: online logsumexp + fused running teacher stats."""
    j = pl.program_id(1)

    @pl.when(j == 0)
    def _init():
        m_sc[...] = jnp.full_like(m_sc, -jnp.inf)
        l_sc[...] = jnp.zeros_like(l_sc)
        ab_sc[...] = jnp.zeros_like(ab_sc)
        w_sc[...] = jnp.zeros_like(w_sc)

    x = s_ref[...].astype(jnp.float32) * inv_t
    t = t_ref[...].astype(jnp.float32)

    if need_col_mask:                               # static: only for ragged C
        col = j * tc + lax.broadcasted_iota(jnp.int32, x.shape, dimension=1)
        valid = col < c_total
        x = jnp.where(valid, x, _NEG_BIG)
        t = jnp.where(valid, t, 0.0)

    # --- online logsumexp over the class (lane) axis ---
    m_prev = m_sc[...]
    m_new = jnp.maximum(m_prev, jnp.max(x, axis=-1, keepdims=True))
    l_sc[...] = (l_sc[...] * jnp.exp(m_prev - m_new)
                 + jnp.sum(jnp.exp(x - m_new), axis=-1, keepdims=True))
    m_sc[...] = m_new

    # --- fused running teacher statistics ---
    log_t = jnp.log(jnp.maximum(t, 1e-30))          # t==0 entries contribute 0
    ab_sc[...] += jnp.sum(t * (log_t - x), axis=-1, keepdims=True)
    w_sc[...] += jnp.sum(t, axis=-1, keepdims=True)

    @pl.when(j == pl.num_programs(1) - 1)
    def _finalize():
        lse = m_sc[...] + jnp.log(l_sc[...])
        # per-row KL: sum_c t*(log t - (x - lse)) = AB + lse * W
        o_ref[...] = ab_sc[...] + lse * w_sc[...]


# --------------------------------------------------------------------------- #
# Tiling
# --------------------------------------------------------------------------- #
def _round_up(x, m):
    return ((x + m - 1) // m) * m


def _cdiv(a, b):
    return (a + b - 1) // b


def _vmem_capacity_bytes():
    try:
        info = pltpu.get_tpu_info()
        cap = getattr(info, "vmem_capacity_bytes", None)
        if cap:
            return int(cap)
    except Exception:
        pass
    return 64 * 1024 * 1024  # conservative (v7x-sized) fallback


def _pick_tiles(B, C, s_itemsize, t_itemsize, block_rows, block_cols):
    # bf16 packs two rows per sublane -> 16-row minimum tile in the row dim.
    sub = 16 if min(s_itemsize, t_itemsize) < 4 else 8

    # Generation-aware working-set budget: 2 inputs x 2 pipeline buffers at
    # input dtype + ~6 live f32 temporaries per element (x, t, exp, log_t,
    # product, reduction partials).  ~55% of physical VMEM:
    #   v5e/v6e (128 MiB) -> ~70 MiB working set, v7x (64 MiB) -> ~35 MiB.
    cap = _vmem_capacity_bytes()
    budget = min(int(cap * 0.55), 72 * 1024 * 1024)
    vmem_limit = min(int(cap * 0.70), 96 * 1024 * 1024)
    bytes_per_elem = 2 * (s_itemsize + t_itemsize) + 6 * 4
    elem_budget = max(budget // bytes_per_elem, sub * 128)

    # --- class (lane) tiles: balanced so over-coverage is < nc * 128 cols ---
    cp128 = _round_up(C, 128)
    max_tc = max(128, (elem_budget // sub) // 128 * 128)
    if block_cols is not None:
        tc = min(_round_up(block_cols, 128), cp128)
    elif cp128 <= max_tc:
        tc = cp128                   # whole class dim in one tile (fast path)
    else:
        nc0 = _cdiv(cp128, max_tc)
        tc = _round_up(_cdiv(C, nc0), 128)
    nc = _cdiv(C, tc)

    # --- row (sublane) tiles: balanced; >= 2 blocks when possible (v7x megacore)
    if block_rows is not None:
        tb = _round_up(max(int(block_rows), 1), sub)
    else:
        tb_max = max(sub, (elem_budget // tc) // sub * sub)
        nb0 = max(1, _cdiv(B, tb_max))
        tb = _round_up(_cdiv(B, nb0), sub)
        if B > sub:
            tb = min(tb, _round_up(_cdiv(B, 2), sub))
    nb = _cdiv(B, tb)
    return tb, tc, nb, nc, vmem_limit


# --------------------------------------------------------------------------- #
# Public entry point
# --------------------------------------------------------------------------- #
def kl_divergency_v2(student_logits, teacher_prob, temperature=2.0,
                     block_rows=None, block_cols=None):
    """Pallas implementation of KL_divergencyv2.forward (reduction='batchmean')."""
    assert student_logits.shape == teacher_prob.shape
    assert student_logits.ndim == 2
    B, C = student_logits.shape
    T = float(temperature)

    s_itemsize = jnp.dtype(student_logits.dtype).itemsize
    t_itemsize = jnp.dtype(teacher_prob.dtype).itemsize
    tb, tc, nb, nc, vmem_limit = _pick_tiles(
        B, C, s_itemsize, t_itemsize, block_rows, block_cols)

    # Ragged class tail handled in-kernel (no jnp.pad / extra HBM pass).
    need_col_mask = (nc * tc) != C
    inv_t = 1.0 / T

    if nc == 1:
        kernel = functools.partial(_kl_rows_single_kernel, inv_t=inv_t,
                                   c_total=C, need_col_mask=need_col_mask)
        row_losses = pl.pallas_call(
            kernel,
            out_shape=jax.ShapeDtypeStruct((B, 1), jnp.float32),
            grid=(nb,),
            in_specs=[
                pl.BlockSpec((tb, tc), lambda i: (i, 0)),
                pl.BlockSpec((tb, tc), lambda i: (i, 0)),
            ],
            out_specs=pl.BlockSpec((tb, 1), lambda i: (i, 0)),
            compiler_params=pltpu.CompilerParams(
                dimension_semantics=("parallel",),
                vmem_limit_bytes=vmem_limit,
            ),
        )(student_logits, teacher_prob)
    else:
        kernel = functools.partial(_kl_rows_stream_kernel, inv_t=inv_t,
                                   c_total=C, tc=tc, need_col_mask=need_col_mask)
        row_losses = pl.pallas_call(
            kernel,
            out_shape=jax.ShapeDtypeStruct((B, 1), jnp.float32),
            grid=(nb, nc),
            in_specs=[
                pl.BlockSpec((tb, tc), lambda i, j: (i, j)),
                pl.BlockSpec((tb, tc), lambda i, j: (i, j)),
            ],
            out_specs=pl.BlockSpec((tb, 1), lambda i, j: (i, 0)),
            scratch_shapes=[pltpu.VMEM((tb, 1), jnp.float32) for _ in range(4)],
            compiler_params=pltpu.CompilerParams(
                dimension_semantics=("parallel", "arbitrary"),
                vmem_limit_bytes=vmem_limit,
            ),
        )(student_logits, teacher_prob)

    # 'batchmean' -> divide by the ORIGINAL batch size, then * T * T
    return jnp.sum(row_losses) * (T * T / B)


# --------------------------------------------------------------------------- #
# Reference + self-test
# --------------------------------------------------------------------------- #
def _reference(student_logits, teacher_prob, temperature=2.0):
    T = float(temperature)
    B = student_logits.shape[0]
    log_p = jax.nn.log_softmax(student_logits.astype(jnp.float32) / T, axis=-1)
    t = teacher_prob.astype(jnp.float32)
    log_t = jnp.where(t > 0.0, jnp.log(jnp.where(t > 0.0, t, 1.0)), 0.0)
    return jnp.sum(t * log_t - t * log_p) * (T * T / B)


if __name__ == "__main__":
    TEMPERATURE = 2.0  # args.temprature_ts in the module

    key = jax.random.PRNGKey(0)
    k1, k2, k3, k4 = jax.random.split(key, 4)

    # --- Test 1: small, deliberately non-aligned (batch, num_classes) ---------
    B, C = 10, 200
    student_logits = jax.random.normal(k1, (B, C), dtype=jnp.float32)
    teacher_prob = jax.nn.softmax(jax.random.normal(k2, (B, C), dtype=jnp.float32), axis=-1)
    # Inject exact zeros into the teacher to exercise the teacher==0 convention.
    teacher_prob = teacher_prob.at[:, :5].set(0.0)
    teacher_prob = teacher_prob / jnp.sum(teacher_prob, axis=-1, keepdims=True)

    ref = _reference(student_logits, teacher_prob, TEMPERATURE)

    # Default tiling: fast path (whole C in one tile), 2 row blocks, ragged
    # row + column tails masked/clipped in-kernel (no jnp.pad).
    loss = jax.block_until_ready(
        kl_divergency_v2(student_logits, teacher_prob, TEMPERATURE))
    assert jnp.allclose(loss, ref, rtol=1e-4, atol=1e-4), (loss, ref)

    # Forced small tiles: streaming online-LSE kernel with ragged class tail.
    loss_tiled = jax.block_until_ready(
        kl_divergency_v2(student_logits, teacher_prob, TEMPERATURE,
                         block_rows=8, block_cols=128))
    assert jnp.allclose(loss_tiled, ref, rtol=1e-4, atol=1e-4), (loss_tiled, ref)

    # --- Test 2: bf16 inputs pass straight through (halved HBM read traffic) --
    B2, C2 = 16, 256
    s_bf16 = jax.random.normal(k3, (B2, C2), dtype=jnp.float32).astype(jnp.bfloat16)
    t_bf16 = jax.nn.softmax(
        jax.random.normal(k4, (B2, C2), dtype=jnp.float32), axis=-1).astype(jnp.bfloat16)
    ref_bf16 = _reference(s_bf16, t_bf16, TEMPERATURE)
    loss_bf16 = jax.block_until_ready(
        kl_divergency_v2(s_bf16, t_bf16, TEMPERATURE))
    assert jnp.allclose(loss_bf16, ref_bf16, rtol=1e-3, atol=1e-3), (loss_bf16, ref_bf16)

    print("KERNEL_OK")
</pallas_src>

<mosaic_0001>
module attributes {stable_mosaic.version = 11 : i64} {
  func.func @_kl_rows_single_kernel(%arg0: i32, %arg1: memref<8x256xf32, #tpu.memory_space<vmem>>, %arg2: memref<8x256xf32, #tpu.memory_space<vmem>>, %arg3: memref<8x1xf32, #tpu.memory_space<vmem>>) attributes {dimension_semantics = [#tpu.dimension_semantics<parallel>], iteration_bounds = array<i64: 2>, scalar_prefetch = 0 : i64, scratch_operands = 0 : i64, tpu.core_type = #tpu.core_type<tc>, window_params = [{transform_indices = @transform_0, window_bounds = array<i64: 8, 256>}, {transform_indices = @transform_1, window_bounds = array<i64: 8, 256>}, {transform_indices = @transform_2, window_bounds = array<i64: 8, 1>}]} {
    %c0 = arith.constant 0 : index
    %c0_0 = arith.constant 0 : index
    %0 = vector.load %arg1[%c0, %c0_0] : memref<8x256xf32, #tpu.memory_space<vmem>>, vector<8x256xf32>
    %cst = arith.constant 5.000000e-01 : f32
    %1 = vector.broadcast %cst : f32 to vector<8x256xf32>
    %2 = arith.mulf %0, %1 : vector<8x256xf32>
    %c0_1 = arith.constant 0 : index
    %c0_2 = arith.constant 0 : index
    %3 = vector.load %arg2[%c0_1, %c0_2] : memref<8x256xf32, #tpu.memory_space<vmem>>, vector<8x256xf32>
    %4 = tpu.iota {dimensions = array<i32: 1>} : vector<8x256xi32>
    %c200_i32 = arith.constant 200 : i32
    %5 = vector.broadcast %c200_i32 : i32 to vector<8x256xi32>
    %6 = arith.cmpi slt, %4, %5 : vector<8x256xi32>
    %cst_3 = arith.constant -1.000000e+30 : f32
    %7 = vector.broadcast %cst_3 : f32 to vector<8x256xf32>
    %8 = arith.select %6, %2, %7 : vector<8x256xi1>, vector<8x256xf32>
    %cst_4 = arith.constant 0.000000e+00 : f32
    %9 = vector.broadcast %cst_4 : f32 to vector<8x256xf32>
    %10 = arith.select %6, %3, %9 : vector<8x256xi1>, vector<8x256xf32>
    %cst_5 = arith.constant dense<0xFF800000> : vector<8xf32>
    %11 = vector.multi_reduction <maximumf>, %8, %cst_5 [1] : vector<8x256xf32> to vector<8xf32>
    %12 = vector.shape_cast %11 : vector<8xf32> to vector<8x1xf32>
    %13 = vector.broadcast %12 : vector<8x1xf32> to vector<8x256xf32>
    %14 = arith.subf %8, %13 : vector<8x256xf32>
    %15 = math.exp %14 : vector<8x256xf32>
    %cst_6 = arith.constant dense<0.000000e+00> : vector<8xf32>
    %16 = vector.multi_reduction <add>, %15, %cst_6 [1] : vector<8x256xf32> to vector<8xf32>
    %17 = vector.shape_cast %16 : vector<8xf32> to vector<8x1xf32>
    %18 = math.log %17 : vector<8x1xf32>
    %19 = arith.addf %12, %18 : vector<8x1xf32>
    %cst_7 = arith.constant 1.000000e-30 : f32
    %20 = vector.broadcast %cst_7 : f32 to vector<8x256xf32>
    %21 = arith.maximumf %10, %20 : vector<8x256xf32>
    %22 = math.log %21 : vector<8x256xf32>
    %23 = arith.subf %22, %8 : vector<8x256xf32>
    %24 = arith.mulf %10, %23 : vector<8x256xf32>
    %cst_8 = arith.constant dense<0.000000e+00> : vector<8xf32>
    %25 = vector.multi_reduction <add>, %24, %cst_8 [1] : vector<8x256xf32> to vector<8xf32>
    %26 = vector.shape_cast %25 : vector<8xf32> to vector<8x1xf32>
    %cst_9 = arith.constant dense<0.000000e+00> : vector<8xf32>
    %27 = vector.multi_reduction <add>, %10, %cst_9 [1] : vector<8x256xf32> to vector<8xf32>
    %28 = vector.shape_cast %27 : vector<8xf32> to vector<8x1xf32>
    %29 = arith.mulf %19, %28 : vector<8x1xf32>
    %30 = arith.addf %26, %29 : vector<8x1xf32>
    %c0_10 = arith.constant 0 : index
    %c0_11 = arith.constant 0 : index
    %31 = vector.load %arg3[%c0_10, %c0_11] : memref<8x1xf32, #tpu.memory_space<vmem>>, vector<8x1xf32>
    tpu.vector_store %arg3[%c0_10, %c0_11], %30 {strides = array<i32>} : memref<8x1xf32, #tpu.memory_space<vmem>>, vector<8x1xf32>,
    return
  }
  func.func @transform_0(%arg0: i32) -> (i32, i32) {
    %c0_i32 = arith.constant 0 : i32
    %c0_i32_0 = arith.constant 0 : i32
    return %arg0, %c0_i32 : i32, i32
  }
  func.func @transform_1(%arg0: i32) -> (i32, i32) {
    %c0_i32 = arith.constant 0 : i32
    %c0_i32_0 = arith.constant 0 : i32
    return %arg0, %c0_i32 : i32, i32
  }
  func.func @transform_2(%arg0: i32) -> (i32, i32) {
    %c0_i32 = arith.constant 0 : i32
    %c0_i32_0 = arith.constant 0 : i32
    return %arg0, %c0_i32 : i32, i32
  }
}

</mosaic_0001>

<llo_original>
// kernel: tpu_custom_call.1
$region0: #{tpu_custom_call.1}
  #allocation0 [shape = 'u32[]', space=smem, size = 0x4, offset = 0x4, fixed_abs, tag = 'smem constant byte address 0x4 - core index']
  #allocation1 [shape = 'u32[144,128]{1,0:T(1,128)}', space=vmem, size = 0x12000, scoped, tag = 'internal scratch']
  %s0 = inlined_call_operand.hbm [shape: f32[10,200], index: 0, kind: input, shape index: {}]
  %s1 = inlined_call_operand.hbm [shape: f32[10,200], index: 1, kind: input, shape index: {}]
  %s2 = inlined_call_operand.vmem [shape: f32[10,1], index: 2, kind: output, shape index: {}]
  %s3 = sld [smem:[#allocation0]]
  $region49: #{tpu_custom_call.1} parent=0
    _
  %s5 = ssub.s32 1, %s3
  %s6 = scalar_select 0, %s5, %s3
  $region1: #{tpu_custom_call.1} parent=0
    #allocation2 [shape = 'u8[16384]{0}', space=vmem, size = 0x4000, scoped, tag = 'input window, operand 0']
    #allocation3 [shape = 's32[2]{0}', space=sflag, size = 0x8, scoped, tag = 'scoped memory for tpu_custom_call.1']
    #allocation4 [shape = 'u8[16384]{0}', space=vmem, size = 0x4000, scoped, tag = 'input window, operand 1']
    #allocation5 [shape = 's32[2]{0}', space=sflag, size = 0x8, scoped, tag = 'scoped memory for tpu_custom_call.1']
    %7 = vsyncpa [#allocation3], 0
    %s8 = scalar_lea.sflag [#allocation3], 1
    %9 = vsyncpa %s8, 0
    %10 = vsyncpa [#allocation5], 0
    %s11 = scalar_lea.sflag [#allocation5], 1
    %12 = vsyncpa %s11, 0
    loop: start=0, step=1, limit=4
    $region2: #{tpu_custom_call.1} parent=1 // loop_pre_header
      _
    $region3: #{tpu_custom_call.1} parent=1 // loop_header
      %s14 = sphi 0, %s18
      %p15 = scmp.ge.s32.totalorder %s14, 4
      %s24 = sphi 0, %s26
      %s27 = sphi 0, %s24
      %s28 = sphi 0, %s27
      %s44 = sphi 0, %s28
      %s50 = sphi 0, %s52
      %s53 = sphi 0, %s50
      %s54 = sphi 0, %s53
      %s70 = sphi 0, %s54
      %s76 = sphi 0, %s78
      %s79 = sphi 0, %s76
      %s80 = sphi 0, %s79
      %s96 = sphi 0, %s80
    $region4: #{tpu_custom_call.1} parent=1 // loop_header_branch
      %17 = sbr.rel (%p15) target = $region8
    $region5: #{tpu_custom_call.1} parent=1 // loop_body
      %s19 = ssub.s32 %s14, 1
      %s20 = ssub.s32 %s14, 2
      %s21 = sadd.s32 %s14, 1
      %s22 = ssub.s32 %s14, %s21
      %p23 = scmp.eq.s32.totalorder %s22, 0
      %s25 = sadd.s32 %s24, 1
      %s26 = scalar_select %p23, %s24, %s25
      %p29 = pneg %p23
      %p30 = scmp.eq.s32.totalorder %s14, 1
      %p31 = por %p29, %p30
      %p32 = scmp.ne.s32.totalorder %s24, %s27
      %p33 = scmp.eq.s32.totalorder %s14, 0
      %p34 = por %p32, %p33
      %p35 = scmp.ne.s32.totalorder %s24, %s27
      %p36 = scmp.eq.s32.totalorder %s19, 1
      %p37 = por %p35, %p36
      %p38 = scmp.ne.s32.totalorder %s27, %s28
      %p39 = scmp.eq.s32.totalorder %s19, 0
      %p40 = por %p38, %p39
      %p41 = scmp.ne.s32.totalorder %s27, %s28
      %p42 = scmp.eq.s32.totalorder %s20, 1
      %p43 = por %p41, %p42
      %p45 = scmp.ne.s32.totalorder %s28, %s44
      %p46 = scmp.eq.s32.totalorder %s20, 0
      %p47 = por %p45, %p46
      %s48 = ssub.s32 %s14, %s21
      %p49 = scmp.eq.s32.totalorder %s48, 0
      %s51 = sadd.s32 %s50, 1
      %s52 = scalar_select %p49, %s50, %s51
      %p55 = pneg %p49
      %p56 = scmp.eq.s32.totalorder %s14, 1
      %p57 = por %p55, %p56
      %p58 = scmp.ne.s32.totalorder %s50, %s53
      %p59 = scmp.eq.s32.totalorder %s14, 0
      %p60 = por %p58, %p59
      %p61 = scmp.ne.s32.totalorder %s50, %s53
      %p62 = scmp.eq.s32.totalorder %s19, 1
      %p63 = por %p61, %p62
      %p64 = scmp.ne.s32.totalorder %s53, %s54
      %p65 = scmp.eq.s32.totalorder %s19, 0
      %p66 = por %p64, %p65
      %p67 = scmp.ne.s32.totalorder %s53, %s54
      %p68 = scmp.eq.s32.totalorder %s20, 1
      %p69 = por %p67, %p68
      %p71 = scmp.ne.s32.totalorder %s54, %s70
      %p72 = scmp.eq.s32.totalorder %s20, 0
      %p73 = por %p71, %p72
      %s74 = ssub.s32 %s14, %s21
      %p75 = scmp.eq.s32.totalorder %s74, 0
      %s77 = sadd.s32 %s76, 1
      %s78 = scalar_select %p75, %s76, %s77
      %p81 = pneg %p75
      %p82 = scmp.eq.s32.totalorder %s14, 1
      %p83 = por %p81, %p82
      %p84 = scmp.ne.s32.totalorder %s76, %s79
      %p85 = scmp.eq.s32.totalorder %s14, 0
      %p86 = por %p84, %p85
      %p87 = scmp.ne.s32.totalorder %s76, %s79
      %p88 = scmp.eq.s32.totalorder %s19, 1
      %p89 = por %p87, %p88
      %p90 = scmp.ne.s32.totalorder %s79, %s80
      %p91 = scmp.eq.s32.totalorder %s19, 0
      %p92 = por %p90, %p91
      %p93 = scmp.ne.s32.totalorder %s79, %s80
      %p94 = scmp.eq.s32.totalorder %s20, 1
      %p95 = por %p93, %p94
      %p97 = scmp.ne.s32.totalorder %s80, %s96
      %p98 = scmp.eq.s32.totalorder %s20, 0
      %p99 = por %p97, %p98
      %p100 = scmp.le.s32.totalorder 1, %s14
      %p101 = scmp.lt.s32.totalorder %s14, 3
      %p102 = pnand %p100, %p101
      %p103 = pneg %p102
      // Predicated region
      $region9: #{tpu_custom_call.1} parent=5 // pred_check
        _
      $region10: #{tpu_custom_call.1} parent=5 // pred_check_branch
        %105 = sbr.rel (%p102) target = $region12
      $region11: #{tpu_custom_call.1} parent=5 // pred_region
        %s106 = ssub.s32 %s14, 1
      $region12: #{tpu_custom_call.1} parent=5 // pred_fallthru
        _
      %p107 = scmp.lt.s32.totalorder %s14, 2
      // Predicated region
      $region13: #{tpu_custom_call.1} parent=5 // pred_check
        %p108 = pneg %p107
      $region14: #{tpu_custom_call.1} parent=5 // pred_check_branch
        %110 = sbr.rel (%p108) target = $region16
      $region15: #{tpu_custom_call.1} parent=5 // pred_region
        // Predicated region
        $region17: #{tpu_custom_call.1} parent=15 // pred_check
          %p111 = pneg %p34
        $region18: #{tpu_custom_call.1} parent=15 // pred_check_branch
          %113 = sbr.rel (%p111) target = $region20
        $region19: #{tpu_custom_call.1} parent=15 // pred_region
          %s114 = sand.u32 %s24, 1
          %s115 = scalar_lea.sflag [#allocation3], %s114
          %s116 = sand.u32 %s24, 1
          %s117 = smul.addr %s116, 16
          %s118 = scalar_lea.vmem [#allocation2], %s117
          %s120 = ssub.s32 256, 256
          %121 = vsyncadd %s115, %s120
          %s122 = smul.addr %s14, 2
          %s123 = smul.addr %s122, 128
          %s124 = scalar_lea.hbm %s0, %s123
          %s126 = sshll.u32 %s118, 4
          %s127 = int_to_ptr.vmem [resolvable:$true] %s126
          %129 = dma.hbm_to_vmem [thread:$0]  %s124, 256, %s127, %s115
        $region20: #{tpu_custom_call.1} parent=15 // pred_fallthru
          _
        // Predicated region
        $region21: #{tpu_custom_call.1} parent=15 // pred_check
          %p130 = pneg %p60
        $region22: #{tpu_custom_call.1} parent=15 // pred_check_branch
          %132 = sbr.rel (%p130) target = $region24
        $region23: #{tpu_custom_call.1} parent=15 // pred_region
          %s133 = sand.u32 %s50, 1
          %s134 = scalar_lea.sflag [#allocation5], %s133
          %s135 = sand.u32 %s50, 1
          %s136 = smul.addr %s135, 16
          %s137 = scalar_lea.vmem [#allocation4], %s136
          %s139 = ssub.s32 256, 256
          %140 = vsyncadd %s134, %s139
          %s141 = smul.addr %s14, 2
          %s142 = smul.addr %s141, 128
          %s143 = scalar_lea.hbm %s1, %s142
          %s145 = sshll.u32 %s137, 4
          %s146 = int_to_ptr.vmem [resolvable:$true] %s145
          %148 = dma.hbm_to_vmem [thread:$0]  %s143, 256, %s146, %s134
        $region24: #{tpu_custom_call.1} parent=15 // pred_fallthru
          _
      $region16: #{tpu_custom_call.1} parent=5 // pred_fallthru
        _
      %p149 = scmp.le.s32.totalorder 1, %s14
      %p150 = scmp.lt.s32.totalorder %s14, 3
      %p151 = pnand %p149, %p150
      %p152 = pneg %p151
      // Predicated region
      $region25: #{tpu_custom_call.1} parent=5 // pred_check
        _
      $region26: #{tpu_custom_call.1} parent=5 // pred_check_branch
        %154 = sbr.rel (%p151) target = $region28
      $region27: #{tpu_custom_call.1} parent=5 // pred_region
        %s155 = ssub.s32 %s14, 1
        %s156 = sand.u32 %s27, 1
        %s157 = scalar_lea.sflag [#allocation3], %s156
        %s158 = sand.u32 %s27, 1
        %s159 = smul.addr %s158, 16
        %s160 = scalar_lea.vmem [#allocation2], %s159
        // Predicated region
        $region29: #{tpu_custom_call.1} parent=27 // pred_check
          %p161 = pneg %p40
        $region30: #{tpu_custom_call.1} parent=27 // pred_check_branch
          %163 = sbr.rel (%p161) target = $region32
        $region31: #{tpu_custom_call.1} parent=27 // pred_region
          %164 = dma.done %s157, 256
        $region32: #{tpu_custom_call.1} parent=27 // pred_fallthru
          _
        %s165 = sand.u32 %s53, 1
        %s166 = scalar_lea.sflag [#allocation5], %s165
        %s167 = sand.u32 %s53, 1
        %s168 = smul.addr %s167, 16
        %s169 = scalar_lea.vmem [#allocation4], %s168
        // Predicated region
        $region33: #{tpu_custom_call.1} parent=27 // pred_check
          %p170 = pneg %p66
        $region34: #{tpu_custom_call.1} parent=27 // pred_check_branch
          %172 = sbr.rel (%p170) target = $region36
        $region35: #{tpu_custom_call.1} parent=27 // pred_region
          %173 = dma.done %s166, 256
        $region36: #{tpu_custom_call.1} parent=27 // pred_fallthru
          _
        %s174 = sand.u32 %s27, 1
        %s175 = scalar_lea.sflag [#allocation3], %s174
        %s176 = sand.u32 %s27, 1
        %s177 = smul.addr %s176, 16
        %s178 = scalar_lea.vmem [#allocation2], %s177
        %p179 = pneg %p40
        %p180 = pneg %p37
        %s181 = sand.u32 %s53, 1
        %s182 = scalar_lea.sflag [#allocation5], %s181
        %s183 = sand.u32 %s53, 1
        %s184 = smul.addr %s183, 16
        %s185 = scalar_lea.vmem [#allocation4], %s184
        %p186 = pneg %p66
        %p187 = pneg %p63
        %p188 = pneg %p92
        %p189 = pneg %p89
        %p190 = scmp.lt.s32.totalorder %s19, 1
        %s191 = scalar_select %p190, %s19, 1
        %s192 = smul.addr %s191, 8
        %s193 = scalar_lea.vmem %s2, %s192
        %p194 = scmp.lt.s32.totalorder %s19, 1
        %s195 = scalar_select %p194, %s19, 1
        %s196 = smul.addr %s195, 8
        %s197 = scalar_lea.vmem %s2, %s196
        %v198 = vld [vmem:[%s160] sm:$0xff]
        %v199 = vld [vmem:[%s160 + $0x8] sm:$0xff]
        %v200 = vmul.f32 %v198, 0.5
        %v201 = vmul.f32 %v199, 0.5
        %v202 = vld [vmem:[%s169] sm:$0xff]
        %v203 = vld [vmem:[%s169 + $0x8] sm:$0xff]
        %v204 = vlaneseq
        %v205 = vand.u32 %v204, 127
        %v206 = vadd.s32 %v205, 128
        %vm207 = vcmp.lt.s32.totalorder %v205, 200
        %vm208 = vcmp.lt.s32.totalorder %v206, 200
        %v209 = vsel %vm207, %v200, -1e+30
        %v210 = vsel %vm208, %v201, -1e+30
        %v211 = vsel %vm207, %v202, 0.0
        %v212 = vsel %vm208, %v203, 0.0
        %v213 = vmax.f32 %v209, %v210
        %214 = vmax.xlane.f32.xlu0 %v213
        %v215 = vpop.xlane.xlu0 %214
        %v216 = vsub.f32 %v209, %v215
        %v217 = vsub.f32 %v210, %v215
        %v218 = vmul.f32 %v216, 1.442695
        %v219 = vpow.pop %v218
        %v220 = vmul.f32 %v217, 1.442695
        %v221 = vpow.pop %v220
        %v222 = vadd.f32 %v219, %v221
        %223 = vadd.xlane.f32.xlu0 %v222
        %v224 = vpop.xlane.xlu0 %223
        %v225 = vlog2.pop %v224
        %v226 = vmul.f32 %v225, 0.6931472
        %v227 = vadd.f32 %v215, %v226
        %v228 = vmax.f32 %v211, 1e-30
        %v229 = vmax.f32 %v212, 1e-30
        %v230 = vlog2.pop %v228
        %v231 = vmul.f32 %v230, 0.6931472
        %v232 = vlog2.pop %v229
        %v233 = vmul.f32 %v232, 0.6931472
        %v234 = vsub.f32 %v231, %v209
        %v235 = vsub.f32 %v233, %v210
        %v236 = vmul.f32 %v211, %v234
        %v237 = vmul.f32 %v212, %v235
        %v238 = vadd.f32 %v236, %v237
        %239 = vadd.xlane.f32.xlu0 %v238
        %v240 = vpop.xlane.xlu0 %239
        %v241 = vadd.f32 %v211, %v212
        %242 = vadd.xlane.f32.xlu0 %v241
        %v243 = vpop.xlane.xlu0 %242
        %v244 = vmul.f32 %v227, %v243
        %v245 = vadd.f32 %v240, %v244
        %vm246 = vcmask 7168
        %247 = vst.msk [vmem:[%s197] sm:$0xff] %vm246, %v245
        %p248 = scmp.lt.s32.totalorder %s19, 1
        %s249 = scalar_select %p248, %s19, 1
        %s250 = smul.addr %s249, 8
        %s251 = scalar_lea.vmem %s2, %s250
        // Predicated region
        $region37: #{tpu_custom_call.1} parent=27 // pred_check
          %p252 = pneg %p89
        $region38: #{tpu_custom_call.1} parent=27 // pred_check_branch
          %254 = sbr.rel (%p252) target = $region40
        $region39: #{tpu_custom_call.1} parent=27 // pred_region
          _
        $region40: #{tpu_custom_call.1} parent=27 // pred_fallthru
          _
      $region28: #{tpu_custom_call.1} parent=5 // pred_fallthru
        _
      %p255 = scmp.le.s32.totalorder 2, %s14
      // Predicated region
      $region41: #{tpu_custom_call.1} parent=5 // pred_check
        %p256 = pneg %p255
      $region42: #{tpu_custom_call.1} parent=5 // pred_check_branch
        %258 = sbr.rel (%p256) target = $region44
      $region43: #{tpu_custom_call.1} parent=5 // pred_region
        %s259 = ssub.s32 %s14, 2
        // Predicated region
        $region45: #{tpu_custom_call.1} parent=43 // pred_check
          %p260 = pneg %p95
        $region46: #{tpu_custom_call.1} parent=43 // pred_check_branch
          %262 = sbr.rel (%p260) target = $region48
        $region47: #{tpu_custom_call.1} parent=43 // pred_region
          %p263 = scmp.lt.s32.totalorder %s20, 1
          %s264 = scalar_select %p263, %s20, 1
          %s265 = smul.addr %s264, 8
          %s266 = scalar_lea.vmem %s2, %s265
        $region48: #{tpu_custom_call.1} parent=43 // pred_fallthru
          _
      $region44: #{tpu_custom_call.1} parent=5 // pred_fallthru
        _
    $region6: #{tpu_custom_call.1} parent=1 // loop_footer
      %s18 = sadd.s32 1, %s14
    $region7: #{tpu_custom_call.1} parent=1 // loop_footer_branch
      %13 = sbr.rel target = $region3
    $region8: #{tpu_custom_call.1} parent=1 // loop_exit
      _
    %267 = vsyncpa [#allocation3], 1
    %s268 = scalar_lea.sflag [#allocation3], 1
    %269 = vsyncpa %s268, 1
    %270 = vsyncpa [#allocation5], 1
    %s271 = scalar_lea.sflag [#allocation5], 1
    %272 = vsyncpa %s271, 1

</llo_original>
